<compile_context>
chip_gen: v7x
topology: tpu7x:2x2x1
jax: 0.10.0
libtpu: 0.0.40
codegen_flags: <defaults>
</compile_context>

<pallas_src>
import numpy as np
import jax
import jax.numpy as jnp
from jax.experimental import pallas as pl
from jax.experimental.pallas import tpu as pltpu


# ---------------------------------------------------------------------------
# Synthetic "config" / one-hot-encoder metadata (what __init__ derives)
# ---------------------------------------------------------------------------
NUM_INPUT_FEATURES = [5, 3, 7]          # cardinalities (len(categories_[i]))
MIN_UNIQUE = 4                          # config['min_unique_values_for_embedding']
DIM_REDUCTION = [0.5, 0.5, 0.5]         # config['dimension_reduction_i']
NUM_NUMERICAL = 3                       # numerical (non-categorical) features
BATCH = 20

EMBED = [n >= MIN_UNIQUE for n in NUM_INPUT_FEATURES]                     # [T, F, T]
NUM_OUT = [int(np.clip(dr * n, 1, n - 1))
           for dr, n in zip(DIM_REDUCTION, NUM_INPUT_FEATURES)]
NUM_OUT = [o if e else n for o, e, n in zip(NUM_OUT, EMBED, NUM_INPUT_FEATURES)]

IN_FEATS = sum(NUM_INPUT_FEATURES) + NUM_NUMERICAL    # 18
OUT_FEATS = sum(NUM_OUT) + NUM_NUMERICAL              # 11


# ---------------------------------------------------------------------------
# Pallas kernel: one fused block-diagonal matmul + bias add per batch tile.
# Writes exactly OUT_FEATS columns (no lane padding ever reaches HBM).
# ---------------------------------------------------------------------------
def _ee_kernel(x_ref, w_ref, b_ref, out_ref):
    out_ref[...] = (
        jnp.dot(x_ref[...], w_ref[...], preferred_element_type=jnp.float32)
        + b_ref[...]
    ).astype(out_ref.dtype)


def _build_fused_params(params):
    """Pack per-block (w, b) into block-diagonal W_full [IN_FEATS, OUT_FEATS]
    and bias row b_full [1, OUT_FEATS]; identity sub-blocks = passthrough."""
    w_full = jnp.zeros((IN_FEATS, OUT_FEATS), jnp.float32)
    b_full = jnp.zeros((1, OUT_FEATS), jnp.float32)
    in_ptr = out_ptr = layer = 0
    for num_in, embed, num_out in zip(NUM_INPUT_FEATURES, EMBED, NUM_OUT):
        if embed:
            w_i, b_i = params[layer]
            w_full = w_full.at[in_ptr:in_ptr + num_in,
                               out_ptr:out_ptr + num_out].set(
                w_i.astype(jnp.float32))
            b_full = b_full.at[0, out_ptr:out_ptr + num_out].set(
                b_i.reshape(-1).astype(jnp.float32))
            layer += 1
        else:
            # non-embedded one-hot block passes through unchanged
            w_full = w_full.at[in_ptr:in_ptr + num_in,
                               out_ptr:out_ptr + num_in].set(
                jnp.eye(num_in, dtype=jnp.float32))
        in_ptr += num_in
        out_ptr += num_out
    # trailing numerical columns pass through unchanged
    w_full = w_full.at[in_ptr:in_ptr + NUM_NUMERICAL,
                       out_ptr:out_ptr + NUM_NUMERICAL].set(
        jnp.eye(NUM_NUMERICAL, dtype=jnp.float32))
    return w_full, b_full


def _choose_batch_tile(batch, batch_tile, min_tiles=4):
    """Pick TB such that: TB % 8 == 0, TB <= batch_tile, TB divides
    ceil8(batch) (so x is padded by at most 7 rows), and the grid has at least
    `min_tiles` steps once the batch is big enough (keeps both v7x TCs busy).
    Returns (padded_batch, TB)."""
    b8 = -(-batch // 8) * 8                   # round batch up to multiple of 8
    m = b8 // 8
    cap = max(8, min(int(batch_tile), -(-b8 // min_tiles)))
    cap = max(8, (cap // 8) * 8)              # caller-provided tile -> mult of 8
    max_d = min(m, cap // 8)                  # bounded by 256 for cap<=2048
    best_d = 1
    for d in range(1, max_d + 1):
        if m % d == 0:
            best_d = d
    return b8, 8 * best_d


def learned_entity_embedding(x, params, *, batch_tile=2048):
    """x: [B, IN_FEATS] f32; params: list of (w [n_in, n_out], b [1, n_out])."""
    B = x.shape[0]
    w_full, b_full = _build_fused_params(params)

    B_pad, TB = _choose_batch_tile(B, batch_tile)
    assert TB % 8 == 0 and B_pad % TB == 0
    if B_pad != B:
        # Only happens when B % 8 != 0; pads < 8 zero rows.
        x = jnp.pad(x, ((0, B_pad - B), (0, 0)))
    n_tiles = B_pad // TB

    out = pl.pallas_call(
        _ee_kernel,
        grid=(n_tiles,),
        in_specs=[
            pl.BlockSpec((TB, IN_FEATS), lambda i: (i, 0)),            # x tile
            pl.BlockSpec((IN_FEATS, OUT_FEATS), lambda i: (0, 0)),     # W_full (grid-invariant)
            pl.BlockSpec((1, OUT_FEATS), lambda i: (0, 0)),            # b_full (grid-invariant)
        ],
        out_specs=pl.BlockSpec((TB, OUT_FEATS), lambda i: (i, 0)),     # exact-width store
        out_shape=jax.ShapeDtypeStruct((B_pad, OUT_FEATS), x.dtype),
        compiler_params=pltpu.CompilerParams(
            dimension_semantics=("parallel",)),   # megacore sharding on v7x
    )(x, w_full, b_full)

    # Strip the (at most 7) padded rows; no column slice needed anymore.
    return out if B_pad == B else out[:B]


# ---------------------------------------------------------------------------
# Pure-JAX reference (mirrors the PyTorch forward on one-hot encoded input:
# embedded blocks -> Linear, non-embedded one-hot blocks and numerical columns
# pass through, concatenated along dim=1)
# ---------------------------------------------------------------------------
def ref_forward(x, params):
    parts = []
    in_ptr = 0
    layer = 0
    for num_in, embed in zip(NUM_INPUT_FEATURES, EMBED):
        blk = x[:, in_ptr:in_ptr + num_in]
        if embed:
            w, b = params[layer]
            parts.append(blk @ w + b)
            layer += 1
        else:
            parts.append(blk)
        in_ptr += num_in
    parts.append(x[:, in_ptr:])
    return jnp.concatenate(parts, axis=1)


if __name__ == "__main__":
    key = jax.random.PRNGKey(0)
    keys = jax.random.split(key, 16)
    ki = 0

    # Build x: one-hot categorical blocks followed by numerical columns.
    blocks = []
    for n in NUM_INPUT_FEATURES:
        idx = jax.random.randint(keys[ki], (BATCH,), 0, n)
        ki += 1
        blocks.append(jax.nn.one_hot(idx, n, dtype=jnp.float32))
    blocks.append(jax.random.normal(keys[ki], (BATCH, NUM_NUMERICAL), jnp.float32))
    ki += 1
    x = jnp.concatenate(blocks, axis=1)               # [20, 18]

    # Deterministic nn.Linear-style init (uniform +/- 1/sqrt(fan_in)) per
    # embedded categorical feature.
    params = []
    for n, e, o in zip(NUM_INPUT_FEATURES, EMBED, NUM_OUT):
        if not e:
            continue
        bound = 1.0 / np.sqrt(n)
        w = jax.random.uniform(keys[ki], (n, o), jnp.float32, -bound, bound)
        ki += 1
        b = jax.random.uniform(keys[ki], (1, o), jnp.float32, -bound, bound)
        ki += 1
        params.append((w, b))

    # Default tiling; for B=20 the tile chooser picks TB=8 -> 3-tile grid,
    # exercising the batch pipeline and the <8-row padding path.
    out = learned_entity_embedding(x, params)
    out = jax.block_until_ready(out)

    ref = ref_forward(x, params)
    assert out.shape == (BATCH, OUT_FEATS), out.shape
    np.testing.assert_allclose(np.asarray(out), np.asarray(ref),
                               rtol=1e-5, atol=1e-5)
    print("KERNEL_OK")
</pallas_src>

<mosaic_0001>
module attributes {stable_mosaic.version = 11 : i64} {
  func.func @_ee_kernel(%arg0: i32, %arg1: memref<8x18xf32, #tpu.memory_space<vmem>>, %arg2: memref<18x11xf32, #tpu.memory_space<vmem>>, %arg3: memref<1x11xf32, #tpu.memory_space<vmem>>, %arg4: memref<8x11xf32, #tpu.memory_space<vmem>>) attributes {dimension_semantics = [#tpu.dimension_semantics<parallel>], iteration_bounds = array<i64: 3>, scalar_prefetch = 0 : i64, scratch_operands = 0 : i64, tpu.core_type = #tpu.core_type<tc>, window_params = [{transform_indices = @transform_0, window_bounds = array<i64: 8, 18>}, {pipeline_mode = #tpu.pipeline_mode<synchronous>, transform_indices = @transform_1, window_bounds = array<i64: 18, 11>}, {pipeline_mode = #tpu.pipeline_mode<synchronous>, transform_indices = @transform_2, window_bounds = array<i64: 1, 11>}, {transform_indices = @transform_3, window_bounds = array<i64: 8, 11>}]} {
    %c0 = arith.constant 0 : index
    %c0_0 = arith.constant 0 : index
    %0 = vector.load %arg1[%c0, %c0_0] : memref<8x18xf32, #tpu.memory_space<vmem>>, vector<8x18xf32>
    %c0_1 = arith.constant 0 : index
    %c0_2 = arith.constant 0 : index
    %1 = vector.load %arg2[%c0_1, %c0_2] : memref<18x11xf32, #tpu.memory_space<vmem>>, vector<18x11xf32>
    %cst = arith.constant dense<0.000000e+00> : vector<8x11xf32>
    %2 = tpu.matmul %0, %1, %cst {dimension_numbers = #tpu.dot_dimension_numbers<[1], [0], [0], [1], [0, 0, 1, 1], [], []>} : vector<8x18xf32>, vector<18x11xf32>, vector<8x11xf32> -> vector<8x11xf32>
    %c0_3 = arith.constant 0 : index
    %c0_4 = arith.constant 0 : index
    %3 = vector.load %arg3[%c0_3, %c0_4] : memref<1x11xf32, #tpu.memory_space<vmem>>, vector<1x11xf32>
    %4 = vector.broadcast %3 : vector<1x11xf32> to vector<8x11xf32>
    %5 = arith.addf %2, %4 : vector<8x11xf32>
    %c0_5 = arith.constant 0 : index
    %c0_6 = arith.constant 0 : index
    %6 = vector.load %arg4[%c0_5, %c0_6] : memref<8x11xf32, #tpu.memory_space<vmem>>, vector<8x11xf32>
    tpu.vector_store %arg4[%c0_5, %c0_6], %5 {strides = array<i32>} : memref<8x11xf32, #tpu.memory_space<vmem>>, vector<8x11xf32>,
    return
  }
  func.func @transform_0(%arg0: i32) -> (i32, i32) {
    %c0_i32 = arith.constant 0 : i32
    %c0_i32_0 = arith.constant 0 : i32
    return %arg0, %c0_i32 : i32, i32
  }
  func.func @transform_1(%arg0: i32) -> (i32, i32) {
    %c0_i32 = arith.constant 0 : i32
    %c0_i32_0 = arith.constant 0 : i32
    %c0_i32_1 = arith.constant 0 : i32
    return %c0_i32, %c0_i32_0 : i32, i32
  }
  func.func @transform_2(%arg0: i32) -> (i32, i32) {
    %c0_i32 = arith.constant 0 : i32
    %c0_i32_0 = arith.constant 0 : i32
    %c0_i32_1 = arith.constant 0 : i32
    return %c0_i32, %c0_i32_0 : i32, i32
  }
  func.func @transform_3(%arg0: i32) -> (i32, i32) {
    %c0_i32 = arith.constant 0 : i32
    %c0_i32_0 = arith.constant 0 : i32
    return %arg0, %c0_i32 : i32, i32
  }
}

</mosaic_0001>

<llo_original>
// kernel: tpu_custom_call.1
$region0: #{tpu_custom_call.1}
  #allocation0 [shape = 'u32[]', space=smem, size = 0x4, offset = 0x4, fixed_abs, tag = 'smem constant byte address 0x4 - core index']
  #allocation1 [shape = 'u32[144,128]{1,0:T(1,128)}', space=vmem, size = 0x12000, scoped, tag = 'internal scratch']
  %s0 = inlined_call_operand.vmem [shape: f32[24,18], index: 0, kind: input, shape index: {}]
  %s1 = inlined_call_operand.vmem [shape: f32[18,11], index: 1, kind: input, shape index: {}]
  %s2 = inlined_call_operand.vmem [shape: f32[1,11], index: 2, kind: input, shape index: {}]
  %s3 = inlined_call_operand.vmem [shape: f32[24,11], index: 3, kind: output, shape index: {}]
  %s4 = sld [smem:[#allocation0]]
  $region45: #{tpu_custom_call.1} parent=0
    _
  %s6 = ssub.s32 1, %s4
  %s7 = scalar_select 0, %s6, %s4
  loop: start=0, step=1, limit=5
  $region2: #{tpu_custom_call.1} parent=0 // loop_pre_header
    _
  $region3: #{tpu_custom_call.1} parent=0 // loop_header
    %s9 = sphi 0, %s13
    %p10 = scmp.ge.s32.totalorder %s9, 5
    %s19 = sphi 0, %s21
    %s22 = sphi 0, %s19
    %s23 = sphi 0, %s22
    %s39 = sphi 0, %s23
    %s43 = sphi 0, %s43
    %s45 = sphi 0, %s43
    %s46 = sphi 0, %s45
    %s60 = sphi 0, %s46
    %s64 = sphi 0, %s64
    %s66 = sphi 0, %s64
    %s67 = sphi 0, %s66
    %s81 = sphi 0, %s67
    %s87 = sphi 0, %s89
    %s90 = sphi 0, %s87
    %s91 = sphi 0, %s90
    %s107 = sphi 0, %s91
  $region4: #{tpu_custom_call.1} parent=0 // loop_header_branch
    %12 = sbr.rel (%p10) target = $region8
  $region5: #{tpu_custom_call.1} parent=0 // loop_body
    %s14 = ssub.s32 %s9, 1
    %s15 = ssub.s32 %s9, 2
    %s16 = sadd.s32 %s9, 1
    %s17 = ssub.s32 %s9, %s16
    %p18 = scmp.eq.s32.totalorder %s17, 0
    %s20 = sadd.s32 %s19, 1
    %s21 = scalar_select %p18, %s19, %s20
    %p24 = pneg %p18
    %p25 = scmp.eq.s32.totalorder %s9, 2
    %p26 = por %p24, %p25
    %p27 = scmp.ne.s32.totalorder %s19, %s22
    %p28 = scmp.eq.s32.totalorder %s9, 0
    %p29 = por %p27, %p28
    %p30 = scmp.ne.s32.totalorder %s19, %s22
    %p31 = scmp.eq.s32.totalorder %s14, 2
    %p32 = por %p30, %p31
    %p33 = scmp.ne.s32.totalorder %s22, %s23
    %p34 = scmp.eq.s32.totalorder %s14, 0
    %p35 = por %p33, %p34
    %p36 = scmp.ne.s32.totalorder %s22, %s23
    %p37 = scmp.eq.s32.totalorder %s15, 2
    %p38 = por %p36, %p37
    %p40 = scmp.ne.s32.totalorder %s23, %s39
    %p41 = scmp.eq.s32.totalorder %s15, 0
    %p42 = por %p40, %p41
    %s44 = sadd.s32 %s43, 1
    %p47 = scmp.eq.s32.totalorder %s9, 2
    %p48 = scmp.ne.s32.totalorder %s43, %s45
    %p49 = scmp.eq.s32.totalorder %s9, 0
    %p50 = por %p48, %p49
    %p51 = scmp.ne.s32.totalorder %s43, %s45
    %p52 = scmp.eq.s32.totalorder %s14, 2
    %p53 = por %p51, %p52
    %p54 = scmp.ne.s32.totalorder %s45, %s46
    %p55 = scmp.eq.s32.totalorder %s14, 0
    %p56 = por %p54, %p55
    %p57 = scmp.ne.s32.totalorder %s45, %s46
    %p58 = scmp.eq.s32.totalorder %s15, 2
    %p59 = por %p57, %p58
    %p61 = scmp.ne.s32.totalorder %s46, %s60
    %p62 = scmp.eq.s32.totalorder %s15, 0
    %p63 = por %p61, %p62
    %s65 = sadd.s32 %s64, 1
    %p68 = scmp.eq.s32.totalorder %s9, 2
    %p69 = scmp.ne.s32.totalorder %s64, %s66
    %p70 = scmp.eq.s32.totalorder %s9, 0
    %p71 = por %p69, %p70
    %p72 = scmp.ne.s32.totalorder %s64, %s66
    %p73 = scmp.eq.s32.totalorder %s14, 2
    %p74 = por %p72, %p73
    %p75 = scmp.ne.s32.totalorder %s66, %s67
    %p76 = scmp.eq.s32.totalorder %s14, 0
    %p77 = por %p75, %p76
    %p78 = scmp.ne.s32.totalorder %s66, %s67
    %p79 = scmp.eq.s32.totalorder %s15, 2
    %p80 = por %p78, %p79
    %p82 = scmp.ne.s32.totalorder %s67, %s81
    %p83 = scmp.eq.s32.totalorder %s15, 0
    %p84 = por %p82, %p83
    %s85 = ssub.s32 %s9, %s16
    %p86 = scmp.eq.s32.totalorder %s85, 0
    %s88 = sadd.s32 %s87, 1
    %s89 = scalar_select %p86, %s87, %s88
    %p92 = pneg %p86
    %p93 = scmp.eq.s32.totalorder %s9, 2
    %p94 = por %p92, %p93
    %p95 = scmp.ne.s32.totalorder %s87, %s90
    %p96 = scmp.eq.s32.totalorder %s9, 0
    %p97 = por %p95, %p96
    %p98 = scmp.ne.s32.totalorder %s87, %s90
    %p99 = scmp.eq.s32.totalorder %s14, 2
    %p100 = por %p98, %p99
    %p101 = scmp.ne.s32.totalorder %s90, %s91
    %p102 = scmp.eq.s32.totalorder %s14, 0
    %p103 = por %p101, %p102
    %p104 = scmp.ne.s32.totalorder %s90, %s91
    %p105 = scmp.eq.s32.totalorder %s15, 2
    %p106 = por %p104, %p105
    %p108 = scmp.ne.s32.totalorder %s91, %s107
    %p109 = scmp.eq.s32.totalorder %s15, 0
    %p110 = por %p108, %p109
    %p111 = scmp.le.s32.totalorder 1, %s9
    %p112 = scmp.lt.s32.totalorder %s9, 4
    %p113 = pnand %p111, %p112
    %p114 = pneg %p113
    // Predicated region
    $region9: #{tpu_custom_call.1} parent=5 // pred_check
      _
    $region10: #{tpu_custom_call.1} parent=5 // pred_check_branch
      %116 = sbr.rel (%p113) target = $region12
    $region11: #{tpu_custom_call.1} parent=5 // pred_region
      %s117 = ssub.s32 %s9, 1
      // Predicated region
      $region13: #{tpu_custom_call.1} parent=11 // pred_check
        %p118 = pneg %p56
      $region14: #{tpu_custom_call.1} parent=11 // pred_check_branch
        %120 = sbr.rel (%p118) target = $region16
      $region15: #{tpu_custom_call.1} parent=11 // pred_region
        _
      $region16: #{tpu_custom_call.1} parent=11 // pred_fallthru
        _
      // Predicated region
      $region17: #{tpu_custom_call.1} parent=11 // pred_check
        %p121 = pneg %p77
      $region18: #{tpu_custom_call.1} parent=11 // pred_check_branch
        %123 = sbr.rel (%p121) target = $region20
      $region19: #{tpu_custom_call.1} parent=11 // pred_region
        _
      $region20: #{tpu_custom_call.1} parent=11 // pred_fallthru
        _
    $region12: #{tpu_custom_call.1} parent=5 // pred_fallthru
      _
    %p124 = scmp.lt.s32.totalorder %s9, 3
    // Predicated region
    $region21: #{tpu_custom_call.1} parent=5 // pred_check
      %p125 = pneg %p124
    $region22: #{tpu_custom_call.1} parent=5 // pred_check_branch
      %127 = sbr.rel (%p125) target = $region24
    $region23: #{tpu_custom_call.1} parent=5 // pred_region
      // Predicated region
      $region25: #{tpu_custom_call.1} parent=23 // pred_check
        %p128 = pneg %p29
      $region26: #{tpu_custom_call.1} parent=23 // pred_check_branch
        %130 = sbr.rel (%p128) target = $region28
      $region27: #{tpu_custom_call.1} parent=23 // pred_region
        %p131 = scmp.lt.s32.totalorder %s9, 2
        %s132 = scalar_select %p131, %s9, 2
        %s133 = smul.addr %s132, 8
        %s134 = scalar_lea.vmem %s0, %s133
      $region28: #{tpu_custom_call.1} parent=23 // pred_fallthru
        _
    $region24: #{tpu_custom_call.1} parent=5 // pred_fallthru
      _
    %p135 = scmp.le.s32.totalorder 1, %s9
    %p136 = scmp.lt.s32.totalorder %s9, 4
    %p137 = pnand %p135, %p136
    %p138 = pneg %p137
    // Predicated region
    $region29: #{tpu_custom_call.1} parent=5 // pred_check
      _
    $region30: #{tpu_custom_call.1} parent=5 // pred_check_branch
      %140 = sbr.rel (%p137) target = $region32
    $region31: #{tpu_custom_call.1} parent=5 // pred_region
      %s141 = ssub.s32 %s9, 1
      %p142 = scmp.lt.s32.totalorder %s14, 2
      %s143 = scalar_select %p142, %s14, 2
      %s144 = smul.addr %s143, 8
      %s145 = scalar_lea.vmem %s0, %s144
      %p146 = pneg %p35
      %p147 = pneg %p32
      %p148 = pneg %p56
      %p149 = pneg %p53
      %p150 = pneg %p77
      %p151 = pneg %p74
      %p152 = pneg %p103
      %p153 = pneg %p100
      %p154 = scmp.lt.s32.totalorder %s14, 2
      %s155 = scalar_select %p154, %s14, 2
      %s156 = smul.addr %s155, 8
      %s157 = scalar_lea.vmem %s3, %s156
      %p158 = scmp.lt.s32.totalorder %s14, 2
      %s159 = scalar_select %p158, %s14, 2
      %s160 = smul.addr %s159, 8
      %s161 = scalar_lea.vmem %s0, %s160
      %p162 = scmp.lt.s32.totalorder %s14, 2
      %s163 = scalar_select %p162, %s14, 2
      %s164 = smul.addr %s163, 8
      %s165 = scalar_lea.vmem %s3, %s164
      %v166 = vld [vmem:[%s161] sm:$0xff]
      %v167 = vld [vmem:[%s1] sm:$0xff]
      %v168 = vld [vmem:[%s1 + $0x8] sm:$0xff]
      %v169 = vld [vmem:[%s1 + $0x10] sm:$0x3]
      %v170 = vld [vmem:[%s2] sm:$0x1]
      %v172 = vlaneseq
      %v173 = vshrl.u32 %v172, 7
      %v174 = vsub.s32 0, %v173
      %v175 = vrot.slane %v170, %v174
      %vm177 = vcmask 146432
      %v179 = vsel %vm177, %v166, 0
      %vm181 = vcmask 1041408
      %v183 = vsel %vm181, %v169, 0
      %185 = vmatprep.subr.mxu0 0.0
      %186 = vmatpush1.msra.mxu0 %v167
      %187 = vmatprep.subr.mxu0 0.0
      %188 = vmatpush1.msra.mxu0 %v168
      %189 = vmatprep.subr.mxu0 0.0
      %190 = vmatpush1.msra.mxu0 %v183
      %191 = vmatprep.subr.mxu0 0.0
      %192 = vmatpush1.msra.mxu0 0.0
      %193 = vmatprep.subr.mxu0 0.0
      %194 = vmatpush1.msra.mxu0 0.0
      %195 = vmatprep.subr.mxu0 0.0
      %196 = vmatpush1.msra.mxu0 0.0
      %197 = vmatprep.subr.mxu0 0.0
      %198 = vmatpush1.msra.mxu0 0.0
      %199 = vmatprep.subr.mxu0 0.0
      %200 = vmatpush1.msra.mxu0 0.0
      %201 = vmatprep.subr.mxu0 0.0
      %202 = vmatpush1.msra.mxu0 0.0
      %203 = vmatprep.subr.mxu0 0.0
      %204 = vmatpush1.msra.mxu0 0.0
      %205 = vmatprep.subr.mxu0 0.0
      %206 = vmatpush1.msra.mxu0 0.0
      %207 = vmatprep.subr.mxu0 0.0
      %208 = vmatpush1.msra.mxu0 0.0
      %209 = vmatprep.subr.mxu0 0.0
      %210 = vmatpush1.msra.mxu0 0.0
      %211 = vmatprep.subr.mxu0 0.0
      %212 = vmatpush1.msra.mxu0 0.0
      %213 = vmatprep.subr.mxu0 0.0
      %214 = vmatpush1.msra.mxu0 0.0
      %215 = vmatprep.subr.mxu0 0.0
      %216 = vmatpush1.msra.mxu0 0.0
      %217 = vmatprep.subr.mxu0 0.0
      %218 = vmatpush1.msra.mxu0 0.0
      %219 = vmatprep.subr.mxu0 0.0
      %220 = vmatpush1.msra.mxu0 0.0
      %221 = vmatprep.subr.mxu0 0.0
      %222 = vmatpush1.msra.mxu0 0.0
      %223 = vmatprep.subr.mxu0 0.0
      %224 = vmatpush1.msra.mxu0 0.0
      %225 = vmatprep.subr.mxu0 0.0
      %226 = vmatpush1.msra.mxu0 0.0
      %227 = vmatprep.subr.mxu0 0.0
      %228 = vmatpush1.msra.mxu0 0.0
      %229 = vmatprep.subr.mxu0 0.0
      %230 = vmatpush1.msra.mxu0 0.0
      %231 = vmatprep.subr.mxu0 0.0
      %232 = vmatpush1.msra.mxu0 0.0
      %233 = vmatprep.subr.mxu0 0.0
      %234 = vmatpush1.msra.mxu0 0.0
      %235 = vmatprep.subr.mxu0 0.0
      %236 = vmatpush1.msra.mxu0 0.0
      %237 = vmatprep.subr.mxu0 0.0
      %238 = vmatpush1.msra.mxu0 0.0
      %239 = vmatprep.subr.mxu0 0.0
      %240 = vmatpush1.msra.mxu0 0.0
      %241 = vmatprep.subr.mxu0 0.0
      %242 = vmatpush1.msra.mxu0 0.0
      %243 = vmatprep.subr.mxu0 0.0
      %244 = vmatpush1.msra.mxu0 0.0
      %245 = vmatprep.subr.mxu0 0.0
      %246 = vmatpush1.msra.mxu0 0.0
      %247 = vmatprep.subr.mxu0 0.0
      %248 = vmatpush1.msra.mxu0 0.0
      %249 = vmatprep.mubr.f32.mxu0 0.0
      %250 = vmatmul.mubr.f32.gmra.mrb[0].mxu0 %v179
      %v251 = vpop.f32.mrb[0].mxu0
      %v252 = vadd.f32 %v175, %v251
      %v253 = vpop.f32.mrb[0].mxu0
      %254 = vdwg.mxu0
      %vm255 = vcmask 89088
      %256 = vst.msk [vmem:[%s165] sm:$0xff] %vm255, %v252
      %p257 = scmp.lt.s32.totalorder %s14, 2
      %s258 = scalar_select %p257, %s14, 2
      %s259 = smul.addr %s258, 8
      %s260 = scalar_lea.vmem %s3, %s259
      // Predicated region
      $region33: #{tpu_custom_call.1} parent=31 // pred_check
        %p261 = pneg %p100
      $region34: #{tpu_custom_call.1} parent=31 // pred_check_branch
        %263 = sbr.rel (%p261) target = $region36
      $region35: #{tpu_custom_call.1} parent=31 // pred_region
        _
      $region36: #{tpu_custom_call.1} parent=31 // pred_fallthru
        _
    $region32: #{tpu_custom_call.1} parent=5 // pred_fallthru
      _
    %p264 = scmp.le.s32.totalorder 2, %s9
    // Predicated region
    $region37: #{tpu_custom_call.1} parent=5 // pred_check
      %p265 = pneg %p264
    $region38: #{tpu_custom_call.1} parent=5 // pred_check_branch
      %267 = sbr.rel (%p265) target = $region40
    $region39: #{tpu_custom_call.1} parent=5 // pred_region
      %s268 = ssub.s32 %s9, 2
      // Predicated region
      $region41: #{tpu_custom_call.1} parent=39 // pred_check
        %p269 = pneg %p106
      $region42: #{tpu_custom_call.1} parent=39 // pred_check_branch
        %271 = sbr.rel (%p269) target = $region44
      $region43: #{tpu_custom_call.1} parent=39 // pred_region
        %p272 = scmp.lt.s32.totalorder %s15, 2
        %s273 = scalar_select %p272, %s15, 2
        %s274 = smul.addr %s273, 8
        %s275 = scalar_lea.vmem %s3, %s274
      $region44: #{tpu_custom_call.1} parent=39 // pred_fallthru
        _
    $region40: #{tpu_custom_call.1} parent=5 // pred_fallthru
      _
  $region6: #{tpu_custom_call.1} parent=0 // loop_footer
    %s13 = sadd.s32 1, %s9
  $region7: #{tpu_custom_call.1} parent=0 // loop_footer_branch
    %8 = sbr.rel target = $region3
  $region8: #{tpu_custom_call.1} parent=0 // loop_exit
    _

</llo_original>
